<compile_context>
chip_gen: v5e
topology: v5e:2x2
jax: 0.10.0
libtpu: 0.0.40
codegen_flags: <defaults>
</compile_context>

<pallas_src>
import math
from functools import partial

import jax
import jax.numpy as jnp
from jax.experimental import pallas as pl
from jax.experimental.pallas import tpu as pltpu

F32 = jnp.float32
LN_EPS = 1e-12          # espnet LayerNorm eps
BN_EPS = 1e-5           # torch BatchNorm1d default eps
NEG_INF = float(jnp.finfo(jnp.float32).min)


# --------------------------------------------------------------------------
# small helpers
# --------------------------------------------------------------------------
def _apply_act(y, act):
    if act == "none":
        return y
    if act == "relu":
        return jnp.maximum(y, 0.0)
    if act == "swish":
        return y * jax.nn.sigmoid(y)
    if act == "tanh":
        return jnp.tanh(y)
    raise ValueError(act)


def _round_up(x, m):
    return ((x + m - 1) // m) * m


def _ln(x, g, b, eps):
    mu = jnp.mean(x, axis=-1, keepdims=True)
    xc = x - mu
    var = jnp.mean(xc * xc, axis=-1, keepdims=True)
    return xc * jax.lax.rsqrt(var + eps) * g + b


_DNUM = (((1,), (1,)), ((), ()))      # contract last dims: A @ B^T


# --------------------------------------------------------------------------
# fused linear kernel: optional LayerNorm prologue, bias, activation, out scale
# --------------------------------------------------------------------------
def _linear_kernel(x_ref, g_ref, b_ref, w_ref, bias_ref, o_ref, *, use_ln, eps, act, out_scale):
    x = x_ref[...]
    if use_ln:
        x = _ln(x, g_ref[...], b_ref[...], eps)
    y = jnp.dot(x, w_ref[...], preferred_element_type=jnp.float32) + bias_ref[...]
    if out_scale != 1.0:
        y = y * out_scale
    o_ref[...] = _apply_act(y, act)


def fused_linear(x, w, b=None, *, ln=None, act="none", out_scale=1.0, max_tm=256):
    """y = act(out_scale * (LN?(x) @ w + b)); x (M,K), w (K,N)."""
    m, k = x.shape
    n = w.shape[1]
    if b is None:
        b = jnp.zeros((n,), F32)
    if ln is None:
        g = jnp.ones((k,), F32)
        bb = jnp.zeros((k,), F32)
        use_ln = False
    else:
        g, bb = ln
        use_ln = True
    tm = min(max_tm, _round_up(m, 8))
    mp = _round_up(m, tm)
    xp = x.astype(F32)
    if mp != m:
        xp = jnp.pad(xp, ((0, mp - m), (0, 0)))
    out = pl.pallas_call(
        partial(_linear_kernel, use_ln=use_ln, eps=LN_EPS, act=act, out_scale=float(out_scale)),
        out_shape=jax.ShapeDtypeStruct((mp, n), F32),
        grid=(mp // tm,),
        in_specs=[
            pl.BlockSpec((tm, k), lambda i: (i, 0)),
            pl.BlockSpec((1, k), lambda i: (0, 0)),
            pl.BlockSpec((1, k), lambda i: (0, 0)),
            pl.BlockSpec((k, n), lambda i: (0, 0)),
            pl.BlockSpec((1, n), lambda i: (0, 0)),
        ],
        out_specs=pl.BlockSpec((tm, n), lambda i: (i, 0)),
        compiler_params=pltpu.CompilerParams(dimension_semantics=("parallel",)),
    )(xp, g.reshape(1, k).astype(F32), bb.reshape(1, k).astype(F32),
      w.astype(F32), b.reshape(1, n).astype(F32))
    return out[:m]


# --------------------------------------------------------------------------
# fused relative-position self-attention kernel (per batch item)
# --------------------------------------------------------------------------
def _attn_kernel(qu_ref, k_ref, v_ref, qvp_ref, sc_ref, m_ref, res_ref, wo_ref, bo_ref, o_ref,
                 *, n_heads, dk, adim):
    # TODO(synk): scores are held fully in VMEM per (batch, head); for very long T a
    # flash-style key-tiled variant would be needed (v7x 64 MiB VMEM).
    half = adim // 2
    scale = 1.0 / math.sqrt(dk)
    mrow = m_ref[0]                     # (1, T) key mask: 1 valid / 0 pad
    sc = sc_ref[...]                    # (T, adim) = [cos(i*w_m) | sin(i*w_m)]
    co = sc[:, :half]
    si = sc[:, half:]
    qu = qu_ref[0]
    kk = k_ref[0]
    vv = v_ref[0]
    qvp = qvp_ref[0]
    ctxs = []
    for h in range(n_heads):
        hs = slice(h * dk, (h + 1) * dk)
        # content term: (q + pos_bias_u) @ k^T
        ac = jax.lax.dot_general(qu[:, hs], kk[:, hs], _DNUM, preferred_element_type=jnp.float32)
        # positional term: analytic rel_shift via angle addition
        qvp_h = qvp[:, h * adim:(h + 1) * adim]
        qs = qvp_h[:, :half]            # multipliers of sin((i-j)w)
        qc = qvp_h[:, half:]            # multipliers of cos((i-j)w)
        a_coef = qs * si + qc * co
        b_coef = qc * si - qs * co
        bd = (jax.lax.dot_general(a_coef, co, _DNUM, preferred_element_type=jnp.float32)
              + jax.lax.dot_general(b_coef, si, _DNUM, preferred_element_type=jnp.float32))
        s = (ac + bd) * scale
        s = jnp.where(mrow > 0.5, s, NEG_INF)
        s = s - jnp.max(s, axis=-1, keepdims=True)      # keep before exp (all-masked rows)
        e = jnp.exp(s)
        p = e * pl.reciprocal(jnp.sum(e, axis=-1, keepdims=True), approx=True)
        p = jnp.where(mrow > 0.5, p, 0.0)
        ctxs.append(jnp.dot(p, vv[:, hs], preferred_element_type=jnp.float32))
    ctx = jnp.concatenate(ctxs, axis=-1)                # (T, adim) lane-dense
    out = jnp.dot(ctx, wo_ref[...], preferred_element_type=jnp.float32) + bo_ref[...]
    o_ref[0] = res_ref[0] + out


def rel_attention(qu, k, v, qvp, possc, maskf, res, wo, bo, n_heads):
    bsz, t, adim = qu.shape
    dk = adim // n_heads
    return pl.pallas_call(
        partial(_attn_kernel, n_heads=n_heads, dk=dk, adim=adim),
        out_shape=jax.ShapeDtypeStruct((bsz, t, adim), F32),
        grid=(bsz,),
        in_specs=[
            pl.BlockSpec((1, t, adim), lambda b: (b, 0, 0)),            # qu
            pl.BlockSpec((1, t, adim), lambda b: (b, 0, 0)),            # k
            pl.BlockSpec((1, t, adim), lambda b: (b, 0, 0)),            # v
            pl.BlockSpec((1, t, n_heads * adim), lambda b: (b, 0, 0)),  # qvp (per-head pos proj)
            pl.BlockSpec((t, adim), lambda b: (0, 0)),                  # sin/cos table (shared)
            pl.BlockSpec((1, 1, t), lambda b: (b, 0, 0)),               # mask
            pl.BlockSpec((1, t, adim), lambda b: (b, 0, 0)),            # residual
            pl.BlockSpec((adim, adim), lambda b: (0, 0)),               # wo
            pl.BlockSpec((1, adim), lambda b: (0, 0)),                  # bo
        ],
        out_specs=pl.BlockSpec((1, t, adim), lambda b: (b, 0, 0)),
        compiler_params=pltpu.CompilerParams(dimension_semantics=("parallel",)),
    )(qu, k, v, qvp, possc, maskf, res.astype(F32),
      wo.astype(F32), bo.reshape(1, adim).astype(F32))


# --------------------------------------------------------------------------
# fused positionwise conv feed-forward block:
#   y = x + res_scale * conv2(relu(conv1(LN(x))))   [+ optional final LN]
# --------------------------------------------------------------------------
def _ff_block_kernel(x_ref, g_ref, b_ref, w1_ref, b1_ref, w2_ref, b2_ref, g2_ref, bb2_ref, o_ref,
                     *, t, ksize, res_scale, final_ln, eps):
    x = x_ref[0]                               # (T, C)
    c = x.shape[-1]
    hdim = w1_ref.shape[-1]
    xn = _ln(x, g_ref[...], b_ref[...], eps)
    pad = (ksize - 1) // 2
    z = jnp.zeros((pad, c), jnp.float32)
    xp = jnp.concatenate([z, xn, z], axis=0)   # (T + 2*pad, C)
    acc = jnp.zeros((t, hdim), jnp.float32)
    for kk in range(ksize):                    # k shifted matmuls (no im2col)
        acc = acc + jnp.dot(xp[kk:kk + t, :], w1_ref[kk], preferred_element_type=jnp.float32)
    h = jnp.maximum(acc + b1_ref[...], 0.0)
    z2 = jnp.zeros((pad, hdim), jnp.float32)
    hp = jnp.concatenate([z2, h, z2], axis=0)  # (T + 2*pad, H)
    acc2 = jnp.zeros((t, c), jnp.float32)
    for kk in range(ksize):
        acc2 = acc2 + jnp.dot(hp[kk:kk + t, :], w2_ref[kk], preferred_element_type=jnp.float32)
    y = x + res_scale * (acc2 + b2_ref[...])
    if final_ln:
        y = _ln(y, g2_ref[...], bb2_ref[...], eps)
    o_ref[0] = y


def ff_conv_block(x, ln_g, ln_b, ffp, *, res_scale=0.5, final_ln=None):
    bsz, t, c = x.shape
    ksize = ffp["w1"].shape[-1]
    w1 = jnp.transpose(ffp["w1"], (2, 1, 0)).astype(F32)   # (K, C, H)
    w2 = jnp.transpose(ffp["w2"], (2, 1, 0)).astype(F32)   # (K, H, C)
    hdim = w1.shape[-1]
    if final_ln is None:
        g2 = jnp.ones((c,), F32)
        b2n = jnp.zeros((c,), F32)
        fln = False
    else:
        g2, b2n = final_ln
        fln = True
    return pl.pallas_call(
        partial(_ff_block_kernel, t=t, ksize=ksize, res_scale=float(res_scale),
                final_ln=fln, eps=LN_EPS),
        out_shape=jax.ShapeDtypeStruct((bsz, t, c), F32),
        grid=(bsz,),
        in_specs=[
            pl.BlockSpec((1, t, c), lambda b: (b, 0, 0)),
            pl.BlockSpec((1, c), lambda b: (0, 0)),
            pl.BlockSpec((1, c), lambda b: (0, 0)),
            pl.BlockSpec((ksize, c, hdim), lambda b: (0, 0, 0)),
            pl.BlockSpec((1, hdim), lambda b: (0, 0)),
            pl.BlockSpec((ksize, hdim, c), lambda b: (0, 0, 0)),
            pl.BlockSpec((1, c), lambda b: (0, 0)),
            pl.BlockSpec((1, c), lambda b: (0, 0)),
            pl.BlockSpec((1, c), lambda b: (0, 0)),
        ],
        out_specs=pl.BlockSpec((1, t, c), lambda b: (b, 0, 0)),
        compiler_params=pltpu.CompilerParams(dimension_semantics=("parallel",)),
    )(x.astype(F32), ln_g.reshape(1, c).astype(F32), ln_b.reshape(1, c).astype(F32),
      w1, ffp["b1"].reshape(1, hdim).astype(F32),
      w2, ffp["b2"].reshape(1, c).astype(F32),
      g2.reshape(1, c).astype(F32), b2n.reshape(1, c).astype(F32))


# --------------------------------------------------------------------------
# fused Conformer convolution module:
#   y = x + pw2( swish( BN( dwconv( GLU( pw1( LN(x) ) ) ) ) ) )   (BN folded, eval)
# --------------------------------------------------------------------------
def _conv_module_kernel(x_ref, g_ref, b_ref, pw1w_ref, pw1b_ref, dww_ref, dwb_ref,
                        bns_ref, bnsh_ref, pw2w_ref, pw2b_ref, o_ref, *, t, ksize, eps):
    x = x_ref[0]                               # (T, C)
    c = x.shape[-1]
    xn = _ln(x, g_ref[...], b_ref[...], eps)
    y = jnp.dot(xn, pw1w_ref[...], preferred_element_type=jnp.float32) + pw1b_ref[...]   # (T, 2C)
    gl = y[:, :c] * jax.nn.sigmoid(y[:, c:])   # GLU
    pad = (ksize - 1) // 2
    z = jnp.zeros((pad, c), jnp.float32)
    gp = jnp.concatenate([z, gl, z], axis=0)   # (T + 2*pad, C)
    dw = dww_ref[...]                          # (K, C)
    acc = jnp.zeros((t, c), jnp.float32)
    for kk in range(ksize):                    # depthwise conv: shifted FMAs
        acc = acc + gp[kk:kk + t, :] * dw[kk:kk + 1, :]
    acc = acc + dwb_ref[...]
    yb = acc * bns_ref[...] + bnsh_ref[...]    # folded eval-mode BatchNorm
    ys = yb * jax.nn.sigmoid(yb)               # swish
    out = jnp.dot(ys, pw2w_ref[...], preferred_element_type=jnp.float32) + pw2b_ref[...]
    o_ref[0] = x + out


def conv_module_block(x, p):
    bsz, t, c = x.shape
    cp = p["conv"]
    ksize = cp["dw_w"].shape[0]
    scale = cp["bn"]["gamma"] / jnp.sqrt(cp["bn"]["rv"] + BN_EPS)
    shift = cp["bn"]["beta"] - cp["bn"]["rm"] * scale
    return pl.pallas_call(
        partial(_conv_module_kernel, t=t, ksize=ksize, eps=LN_EPS),
        out_shape=jax.ShapeDtypeStruct((bsz, t, c), F32),
        grid=(bsz,),
        in_specs=[
            pl.BlockSpec((1, t, c), lambda b: (b, 0, 0)),
            pl.BlockSpec((1, c), lambda b: (0, 0)),
            pl.BlockSpec((1, c), lambda b: (0, 0)),
            pl.BlockSpec((c, 2 * c), lambda b: (0, 0)),
            pl.BlockSpec((1, 2 * c), lambda b: (0, 0)),
            pl.BlockSpec((ksize, c), lambda b: (0, 0)),
            pl.BlockSpec((1, c), lambda b: (0, 0)),
            pl.BlockSpec((1, c), lambda b: (0, 0)),
            pl.BlockSpec((1, c), lambda b: (0, 0)),
            pl.BlockSpec((c, c), lambda b: (0, 0)),
            pl.BlockSpec((1, c), lambda b: (0, 0)),
        ],
        out_specs=pl.BlockSpec((1, t, c), lambda b: (b, 0, 0)),
        compiler_params=pltpu.CompilerParams(dimension_semantics=("parallel",)),
    )(x.astype(F32), p["ln_conv_g"].reshape(1, c).astype(F32), p["ln_conv_b"].reshape(1, c).astype(F32),
      cp["pw1_w"].astype(F32), cp["pw1_b"].reshape(1, 2 * c).astype(F32),
      cp["dw_w"].astype(F32), cp["dw_b"].reshape(1, c).astype(F32),
      scale.reshape(1, c).astype(F32), shift.reshape(1, c).astype(F32),
      cp["pw2_w"].astype(F32), cp["pw2_b"].reshape(1, c).astype(F32))


# --------------------------------------------------------------------------
# Postnet layer: conv1d('same', no bias) + folded BN + activation, one kernel
# --------------------------------------------------------------------------
def _conv_bn_act_kernel(x_ref, w_ref, s_ref, sh_ref, o_ref, *, t, ksize, act):
    x = x_ref[0]                               # (T, Cin)
    cin = x.shape[-1]
    cout = w_ref.shape[-1]
    pad = (ksize - 1) // 2
    z = jnp.zeros((pad, cin), jnp.float32)
    xp = jnp.concatenate([z, x, z], axis=0)
    acc = jnp.zeros((t, cout), jnp.float32)
    for kk in range(ksize):
        acc = acc + jnp.dot(xp[kk:kk + t, :], w_ref[kk], preferred_element_type=jnp.float32)
    y = acc * s_ref[...] + sh_ref[...]
    o_ref[0] = _apply_act(y, act)


def conv_bn_act(x, w_torch, bn, act):
    bsz, t, cin = x.shape
    cout, _, ksize = w_torch.shape
    w = jnp.transpose(w_torch, (2, 1, 0)).astype(F32)       # (K, Cin, Cout)
    scale = bn["gamma"] / jnp.sqrt(bn["rv"] + BN_EPS)
    shift = bn["beta"] - bn["rm"] * scale
    return pl.pallas_call(
        partial(_conv_bn_act_kernel, t=t, ksize=ksize, act=act),
        out_shape=jax.ShapeDtypeStruct((bsz, t, cout), F32),
        grid=(bsz,),
        in_specs=[
            pl.BlockSpec((1, t, cin), lambda b: (b, 0, 0)),
            pl.BlockSpec((ksize, cin, cout), lambda b: (0, 0, 0)),
            pl.BlockSpec((1, cout), lambda b: (0, 0)),
            pl.BlockSpec((1, cout), lambda b: (0, 0)),
        ],
        out_specs=pl.BlockSpec((1, t, cout), lambda b: (b, 0, 0)),
        compiler_params=pltpu.CompilerParams(dimension_semantics=("parallel",)),
    )(x.astype(F32), w, scale.reshape(1, cout).astype(F32), shift.reshape(1, cout).astype(F32))


# --------------------------------------------------------------------------
# glue: combined QKV + positional projection weights (head-wise wpos folded in)
# --------------------------------------------------------------------------
def _build_attn_proj(a, n_heads, adim):
    dk = adim // n_heads
    # permute projected-pe channels so sin-multipliers / cos-multipliers are contiguous halves
    perm = jnp.concatenate([jnp.arange(0, adim, 2), jnp.arange(1, adim, 2)])
    wq, wk, wv, wpos = a["wq"], a["wk"], a["wv"], a["wpos"]
    w_list, b_list = [], []
    for h in range(n_heads):
        cols = slice(h * dk, (h + 1) * dk)
        wph = wpos[:, cols]                           # (adim, dk)
        wqp = wq[:, cols] @ wph.T                     # (adim, adim): x -> (q_h + pbv_h) @ wpos_h^T
        bqp = (a["bq"][cols] + a["pos_bias_v"][h]) @ wph.T
        w_list.append(wqp[:, perm])
        b_list.append(bqp[perm])
    w_qpos = jnp.concatenate(w_list, axis=1)          # (adim, H*adim)
    b_qpos = jnp.concatenate(b_list, axis=0)
    pbu = a["pos_bias_u"].reshape(-1)
    w_big = jnp.concatenate([wq, wk, wv, w_qpos], axis=1)
    b_big = jnp.concatenate([a["bq"] + pbu, a["bk"], a["bv"], b_qpos], axis=0)
    return w_big, b_big


def conformer_layer(x, possc, maskf, p, n_heads):
    bsz, t, adim = x.shape
    # 1. macaron feed-forward (ff_scale = 0.5), LN fused
    x = ff_conv_block(x, p["ln_ffm_g"], p["ln_ffm_b"], p["ff_macaron"], res_scale=0.5)
    # 2. relative-position self-attention: one fused LN+projection, one fused attn kernel
    a = p["attn"]
    w_big, b_big = _build_attn_proj(a, n_heads, adim)
    proj = fused_linear(x.reshape(bsz * t, adim), w_big, b_big,
                        ln=(p["ln_mha_g"], p["ln_mha_b"]))
    qu = proj[:, :adim].reshape(bsz, t, adim)
    k = proj[:, adim:2 * adim].reshape(bsz, t, adim)
    v = proj[:, 2 * adim:3 * adim].reshape(bsz, t, adim)
    qvp = proj[:, 3 * adim:].reshape(bsz, t, n_heads * adim)
    x = rel_attention(qu, k, v, qvp, possc, maskf, x, a["wo"], a["bo"], n_heads)
    # 3. convolution module (LN + GLU + depthwise + BN/swish + pointwise + residual fused)
    x = conv_module_block(x, p)
    # 4. feed-forward (ff_scale = 0.5) with the layer-final LayerNorm fused as epilogue
    x = ff_conv_block(x, p["ln_ff_g"], p["ln_ff_b"], p["ff"], res_scale=0.5,
                      final_ln=(p["ln_final_g"], p["ln_final_b"]))
    return x


def decoder_forward(params, phoneme, mask):
    """phoneme (B,T,1+n_var) with ids in channel 0; mask (B,1,T) bool."""
    bsz, t, _ = phoneme.shape
    n_heads = params["n_heads"]
    ids = phoneme[:, :, 0].astype(jnp.int32)
    variance = phoneme[:, :, 1:].astype(F32)
    emb = jnp.take(params["embedding"], ids, axis=0)                 # (B,T,edim), row 0 = zeros
    p_input = jnp.concatenate([emb, variance], axis=-1)              # (B,T,idim)
    idim = p_input.shape[-1]
    adim = params["pre_w"].shape[1]

    # pre-Linear; sqrt(adim) xscale of RelPositionalEncoding folded into the output
    x = fused_linear(p_input.reshape(bsz * t, idim), params["pre_w"], params["pre_b"],
                     out_scale=math.sqrt(adim)).reshape(bsz, t, adim)

    # sinusoid table (shared across batch & heads): [cos(i*w_m) | sin(i*w_m)]
    inv = jnp.exp(jnp.arange(0, adim, 2, dtype=F32) * (-math.log(10000.0) / adim))
    ang = jnp.arange(t, dtype=F32)[:, None] * inv[None, :]
    possc = jnp.concatenate([jnp.cos(ang), jnp.sin(ang)], axis=-1)   # (T, adim)
    maskf = mask.astype(F32)                                         # (B,1,T)

    for blk in params["blocks"]:
        x = conformer_layer(x, possc, maskf, blk, n_heads)

    # after_norm fused into the post projection
    out1 = fused_linear(x.reshape(bsz * t, adim), params["post_w"], params["post_b"],
                        ln=(params["after_norm_g"], params["after_norm_b"])).reshape(bsz, t, -1)
    mask_bt1 = jnp.transpose(mask, (0, 2, 1))                        # (B,T,1)
    out1 = jnp.where(mask_bt1, out1, 0.0)

    # Postnet: 5 conv(k=5) layers, folded eval BN; tanh on all but last
    y = out1
    n_post = len(params["postnet"])
    for i, lyr in enumerate(params["postnet"]):
        y = conv_bn_act(y, lyr["w"], lyr["bn"], act="tanh" if i < n_post - 1 else "none")
    out2 = jnp.where(mask_bt1, out1 + y, 0.0)
    return out1, out2


# --------------------------------------------------------------------------
# deterministic parameter initialization (synthetic weights)
# --------------------------------------------------------------------------
def init_params(key, *, idim, edim, adim, odim, phoneme_dim, num_block, n_heads=2,
                pw_kernel=3, cnn_kernel=31, postnet_layers=5, postnet_filts=5):
    keys = iter(jax.random.split(key, 1024))

    def w(shape, scale=0.05):
        return (scale * jax.random.normal(next(keys), shape)).astype(F32)

    zeros = lambda s: jnp.zeros(s, F32)
    ones = lambda s: jnp.ones(s, F32)
    dk = adim // n_heads

    emb = w((phoneme_dim + 1, edim)).at[0].set(0.0)       # padding_idx = 0

    def ff_params():
        units = adim * 4
        return {"w1": w((units, adim, pw_kernel)), "b1": zeros((units,)),
                "w2": w((adim, units, pw_kernel)), "b2": zeros((adim,))}

    def bn_params(c):
        return {"gamma": ones((c,)), "beta": zeros((c,)), "rm": zeros((c,)), "rv": ones((c,))}

    blocks = []
    for _ in range(num_block):
        blocks.append({
            "ln_ffm_g": ones((adim,)), "ln_ffm_b": zeros((adim,)),
            "ff_macaron": ff_params(),
            "ln_mha_g": ones((adim,)), "ln_mha_b": zeros((adim,)),
            "attn": {
                "wq": w((adim, adim)), "bq": zeros((adim,)),
                "wk": w((adim, adim)), "bk": zeros((adim,)),
                "wv": w((adim, adim)), "bv": zeros((adim,)),
                "wo": w((adim, adim)), "bo": zeros((adim,)),
                "wpos": w((adim, adim)),
                "pos_bias_u": w((n_heads, dk)),
                "pos_bias_v": w((n_heads, dk)),
            },
            "ln_conv_g": ones((adim,)), "ln_conv_b": zeros((adim,)),
            "conv": {
                "pw1_w": w((adim, 2 * adim)), "pw1_b": zeros((2 * adim,)),
                "dw_w": w((cnn_kernel, adim)), "dw_b": zeros((adim,)),
                "bn": bn_params(adim),
                "pw2_w": w((adim, adim)), "pw2_b": zeros((adim,)),
            },
            "ln_ff_g": ones((adim,)), "ln_ff_b": zeros((adim,)),
            "ff": ff_params(),
            "ln_final_g": ones((adim,)), "ln_final_b": zeros((adim,)),
        })

    postnet = []
    for layer in range(postnet_layers - 1):
        ich = odim if layer == 0 else adim
        postnet.append({"w": w((adim, ich, postnet_filts)), "bn": bn_params(adim)})
    postnet.append({"w": w((odim, adim, postnet_filts)), "bn": bn_params(odim)})

    return {
        "embedding": emb,
        "pre_w": w((idim, adim)), "pre_b": zeros((adim,)),
        "blocks": blocks,
        "after_norm_g": ones((adim,)), "after_norm_b": zeros((adim,)),
        "post_w": w((adim, odim)), "post_b": zeros((odim,)),
        "postnet": postnet,
        "n_heads": n_heads,
    }


# --------------------------------------------------------------------------
if __name__ == "__main__":
    key = jax.random.PRNGKey(0)
    B, T = 2, 8
    phoneme_dim = 10
    edim = 28
    n_var = 4
    idim = edim + n_var        # concat(embedding, variance)
    adim = 32                  # attention dim (2 heads x 16)
    odim = 16
    num_block = 2

    pkey, idkey, vkey = jax.random.split(key, 3)
    params = init_params(pkey, idim=idim, edim=edim, adim=adim, odim=odim,
                         phoneme_dim=phoneme_dim, num_block=num_block)

    lengths = jnp.array([T, T - 2], dtype=jnp.int32)
    mask = (jnp.arange(T)[None, :] < lengths[:, None])[:, None, :]        # (B, 1, T) bool

    ids = jax.random.randint(idkey, (B, T), 1, phoneme_dim + 1)
    ids = jnp.where(mask[:, 0, :], ids, 0)                                # padded positions -> id 0
    variance = jax.random.normal(vkey, (B, T, n_var), dtype=F32)
    phoneme = jnp.concatenate([ids.astype(F32)[..., None], variance], axis=-1)   # (B, T, 1+n_var)

    out1, out2 = decoder_forward(params, phoneme, mask)
    jax.block_until_ready((out1, out2))

    assert out1.shape == (B, T, odim) and out2.shape == (B, T, odim)
    assert bool(jnp.all(jnp.isfinite(out1))) and bool(jnp.all(jnp.isfinite(out2)))
    print("KERNEL_OK")
</pallas_src>

<mosaic_0001>
module attributes {stable_mosaic.version = 11 : i64} {
  func.func @_linear_kernel(%arg0: i32, %arg1: memref<16x32xf32, #tpu.memory_space<vmem>>, %arg2: memref<1x32xf32, #tpu.memory_space<vmem>>, %arg3: memref<1x32xf32, #tpu.memory_space<vmem>>, %arg4: memref<32x32xf32, #tpu.memory_space<vmem>>, %arg5: memref<1x32xf32, #tpu.memory_space<vmem>>, %arg6: memref<16x32xf32, #tpu.memory_space<vmem>>) attributes {dimension_semantics = [#tpu.dimension_semantics<parallel>], iteration_bounds = array<i64: 1>, scalar_prefetch = 0 : i64, scratch_operands = 0 : i64, tpu.core_type = #tpu.core_type<tc>, window_params = [{transform_indices = @transform_0, window_bounds = array<i64: 16, 32>}, {pipeline_mode = #tpu.pipeline_mode<synchronous>, transform_indices = @transform_1, window_bounds = array<i64: 1, 32>}, {pipeline_mode = #tpu.pipeline_mode<synchronous>, transform_indices = @transform_2, window_bounds = array<i64: 1, 32>}, {pipeline_mode = #tpu.pipeline_mode<synchronous>, transform_indices = @transform_3, window_bounds = array<i64: 32, 32>}, {pipeline_mode = #tpu.pipeline_mode<synchronous>, transform_indices = @transform_4, window_bounds = array<i64: 1, 32>}, {transform_indices = @transform_5, window_bounds = array<i64: 16, 32>}]} {
    %c0 = arith.constant 0 : index
    %c0_0 = arith.constant 0 : index
    %0 = vector.load %arg1[%c0, %c0_0] : memref<16x32xf32, #tpu.memory_space<vmem>>, vector<16x32xf32>
    %c0_1 = arith.constant 0 : index
    %c0_2 = arith.constant 0 : index
    %1 = vector.load %arg4[%c0_1, %c0_2] : memref<32x32xf32, #tpu.memory_space<vmem>>, vector<32x32xf32>
    %cst = arith.constant dense<0.000000e+00> : vector<16x32xf32>
    %2 = tpu.matmul %0, %1, %cst {dimension_numbers = #tpu.dot_dimension_numbers<[1], [0], [0], [1], [0, 0, 1, 1], [], []>} : vector<16x32xf32>, vector<32x32xf32>, vector<16x32xf32> -> vector<16x32xf32>
    %c0_3 = arith.constant 0 : index
    %c0_4 = arith.constant 0 : index
    %3 = vector.load %arg5[%c0_3, %c0_4] : memref<1x32xf32, #tpu.memory_space<vmem>>, vector<1x32xf32>
    %4 = vector.broadcast %3 : vector<1x32xf32> to vector<16x32xf32>
    %5 = arith.addf %2, %4 : vector<16x32xf32>
    %cst_5 = arith.constant 5.65685415 : f32
    %6 = vector.broadcast %cst_5 : f32 to vector<16x32xf32>
    %7 = arith.mulf %5, %6 : vector<16x32xf32>
    %c0_6 = arith.constant 0 : index
    %c0_7 = arith.constant 0 : index
    %8 = vector.load %arg6[%c0_6, %c0_7] : memref<16x32xf32, #tpu.memory_space<vmem>>, vector<16x32xf32>
    tpu.vector_store %arg6[%c0_6, %c0_7], %7 {strides = array<i32>} : memref<16x32xf32, #tpu.memory_space<vmem>>, vector<16x32xf32>,
    return
  }
  func.func @transform_0(%arg0: i32) -> (i32, i32) {
    %c0_i32 = arith.constant 0 : i32
    %c0_i32_0 = arith.constant 0 : i32
    return %arg0, %c0_i32 : i32, i32
  }
  func.func @transform_1(%arg0: i32) -> (i32, i32) {
    %c0_i32 = arith.constant 0 : i32
    %c0_i32_0 = arith.constant 0 : i32
    %c0_i32_1 = arith.constant 0 : i32
    return %c0_i32, %c0_i32_0 : i32, i32
  }
  func.func @transform_2(%arg0: i32) -> (i32, i32) {
    %c0_i32 = arith.constant 0 : i32
    %c0_i32_0 = arith.constant 0 : i32
    %c0_i32_1 = arith.constant 0 : i32
    return %c0_i32, %c0_i32_0 : i32, i32
  }
  func.func @transform_3(%arg0: i32) -> (i32, i32) {
    %c0_i32 = arith.constant 0 : i32
    %c0_i32_0 = arith.constant 0 : i32
    %c0_i32_1 = arith.constant 0 : i32
    return %c0_i32, %c0_i32_0 : i32, i32
  }
  func.func @transform_4(%arg0: i32) -> (i32, i32) {
    %c0_i32 = arith.constant 0 : i32
    %c0_i32_0 = arith.constant 0 : i32
    %c0_i32_1 = arith.constant 0 : i32
    return %c0_i32, %c0_i32_0 : i32, i32
  }
  func.func @transform_5(%arg0: i32) -> (i32, i32) {
    %c0_i32 = arith.constant 0 : i32
    %c0_i32_0 = arith.constant 0 : i32
    return %arg0, %c0_i32 : i32, i32
  }
}

</mosaic_0001>

<llo_original>
// kernel: tpu_custom_call.1
$region0: #{tpu_custom_call.1}
  #allocation0 [shape = 'u32[]', space=smem, size = 0x4, offset = 0x4, fixed_abs, tag = 'smem constant byte address 0x4 - core index']
  #allocation1 [shape = 'u32[72,128]{1,0:T(1,128)}', space=vmem, size = 0x9000, scoped, tag = 'internal scratch']
  %s0 = inlined_call_operand.hbm [shape: f32[16,32], index: 0, kind: input, shape index: {}]
  %s1 = inlined_call_operand.hbm [shape: f32[1,32], index: 1, kind: input, shape index: {}]
  %s2 = inlined_call_operand.vmem [shape: f32[1,32], index: 2, kind: input, shape index: {}]
  %s3 = inlined_call_operand.hbm [shape: f32[32,32], index: 3, kind: input, shape index: {}]
  %s4 = inlined_call_operand.vmem [shape: f32[1,32], index: 4, kind: input, shape index: {}]
  %s5 = inlined_call_operand.hbm [shape: f32[16,32], index: 5, kind: output, shape index: {}]
  %s6 = sld [smem:[#allocation0]]
  $region42: #{tpu_custom_call.1} parent=0
    _
  %s8 = ssub.s32 1, %s6
  %s9 = scalar_select 0, %s8, %s6
  $region1: #{tpu_custom_call.1} parent=0
    #allocation2 [shape = 'u8[8192]{0}', space=vmem, size = 0x2000, scoped, tag = 'input window, operand 0, single buffered']
    #allocation3 [shape = 's32[1]{0}', space=sflag, size = 0x4, scoped, tag = 'scoped memory for tpu_custom_call.1']
    #allocation4 [shape = 's32[1]{0}', space=sflag, size = 0x4, scoped, tag = 'scoped memory for tpu_custom_call.1']
    #allocation5 [shape = 'u8[512]{0}', space=vmem, size = 0x400, scoped, tag = 'input window, operand 1, single buffered']
    #allocation6 [shape = 's32[1]{0}', space=sflag, size = 0x4, scoped, tag = 'scoped memory for tpu_custom_call.1']
    #allocation7 [shape = 'u8[16384]{0}', space=vmem, size = 0x4000, scoped, tag = 'input window, operand 3, single buffered']
    #allocation8 [shape = 'u8[8192]{0}', space=vmem, size = 0x2000, scoped, tag = 'output window, operand 0, single buffered']
    %10 = vsyncpa [#allocation3], 0
    %11 = vsyncpa [#allocation6], 0
    %12 = vsyncpa [#allocation4], 0
    // Predicated region
    $region2: #{tpu_custom_call.1} parent=1 // pred_check
      _
    $region3: #{tpu_custom_call.1} parent=1 // pred_check_branch
      %14 = sbr.rel (0) target = $region5
    $region4: #{tpu_custom_call.1} parent=1 // pred_region
      %16 = vsyncadd [#allocation3], 0
      %s17 = sshll.u32 %s0, 4
      %s18 = int_to_ptr.hbm [resolvable:$true] %s17
      %s19 = sshll.u32 [#allocation2], 4
      %s20 = int_to_ptr.vmem [resolvable:$true] %s19
      %25 = dma.hbm_to_vmem [thread:$0]  %s18, 256, %s20, [#allocation3], 128, 128, 8
    $region5: #{tpu_custom_call.1} parent=1 // pred_fallthru
      _
    // Predicated region
    $region6: #{tpu_custom_call.1} parent=1 // pred_check
      _
    $region7: #{tpu_custom_call.1} parent=1 // pred_check_branch
      %27 = sbr.rel (0) target = $region9
    $region8: #{tpu_custom_call.1} parent=1 // pred_region
      %29 = vsyncadd [#allocation6], 0
      %s31 = sshll.u32 %s1, 4
      %s32 = int_to_ptr.hbm [resolvable:$true] %s31
      %s33 = sshll.u32 [#allocation5], 4
      %s34 = int_to_ptr.vmem [resolvable:$true] %s33
      %36 = dma.hbm_to_vmem [thread:$0]  %s32, 16, %s34, [#allocation6]
    $region9: #{tpu_custom_call.1} parent=1 // pred_fallthru
      _
    // Predicated region
    $region10: #{tpu_custom_call.1} parent=1 // pred_check
      _
    $region11: #{tpu_custom_call.1} parent=1 // pred_check_branch
      %38 = sbr.rel (0) target = $region13
    $region12: #{tpu_custom_call.1} parent=1 // pred_region
      _
    $region13: #{tpu_custom_call.1} parent=1 // pred_fallthru
      _
    // Predicated region
    $region14: #{tpu_custom_call.1} parent=1 // pred_check
      _
    $region15: #{tpu_custom_call.1} parent=1 // pred_check_branch
      %40 = sbr.rel (0) target = $region17
    $region16: #{tpu_custom_call.1} parent=1 // pred_region
      %42 = vsyncadd [#allocation6], 0
      %s43 = sshll.u32 %s3, 4
      %s44 = int_to_ptr.hbm [resolvable:$true] %s43
      %s45 = sshll.u32 [#allocation7], 4
      %s46 = int_to_ptr.vmem [resolvable:$true] %s45
      %51 = dma.hbm_to_vmem [thread:$0]  %s44, 512, %s46, [#allocation6], 128, 128, 8
    $region17: #{tpu_custom_call.1} parent=1 // pred_fallthru
      _
    // Predicated region
    $region18: #{tpu_custom_call.1} parent=1 // pred_check
      _
    $region19: #{tpu_custom_call.1} parent=1 // pred_check_branch
      %53 = sbr.rel (0) target = $region21
    $region20: #{tpu_custom_call.1} parent=1 // pred_region
      _
    $region21: #{tpu_custom_call.1} parent=1 // pred_fallthru
      _
    // Predicated region
    $region22: #{tpu_custom_call.1} parent=1 // pred_check
      _
    $region23: #{tpu_custom_call.1} parent=1 // pred_check_branch
      %55 = sbr.rel (0) target = $region25
    $region24: #{tpu_custom_call.1} parent=1 // pred_region
      %57 = dma.done [#allocation3], 256
    $region25: #{tpu_custom_call.1} parent=1 // pred_fallthru
      _
    // Predicated region
    $region26: #{tpu_custom_call.1} parent=1 // pred_check
      _
    $region27: #{tpu_custom_call.1} parent=1 // pred_check_branch
      %59 = sbr.rel (0) target = $region29
    $region28: #{tpu_custom_call.1} parent=1 // pred_region
      %61 = dma.done [#allocation6], 16
    $region29: #{tpu_custom_call.1} parent=1 // pred_fallthru
      _
    // Predicated region
    $region30: #{tpu_custom_call.1} parent=1 // pred_check
      _
    $region31: #{tpu_custom_call.1} parent=1 // pred_check_branch
      %63 = sbr.rel (0) target = $region33
    $region32: #{tpu_custom_call.1} parent=1 // pred_region
      %65 = dma.done [#allocation6], 512
    $region33: #{tpu_custom_call.1} parent=1 // pred_fallthru
      _
    %v66 = vld [vmem:[#allocation2] sm:$0xff]
    %v67 = vld [vmem:[#allocation2 + $0x8] sm:$0xff]
    %v68 = vld [vmem:[#allocation7] sm:$0xff]
    %v69 = vld [vmem:[#allocation7 + $0x8] sm:$0xff]
    %v70 = vld [vmem:[#allocation7 + $0x10] sm:$0xff]
    %v71 = vld [vmem:[#allocation7 + $0x18] sm:$0xff]
    %v72 = vld [vmem:[%s4] sm:$0x1]
    %v74 = vperm.slane %v72, 0
    %vm76 = vcmask 261120
    %v78 = vsel %vm76, %v66, 0
    %v81 = vsel %vm76, %v67, 0
    %83 = vmatpush.msra.mxu0 0.0
    %84 = vmatpush.msra.mxu0 0.0
    %85 = vmatpush.msra.mxu0 0.0
    %86 = vmatpush.msra.mxu0 0.0
    %87 = vmatpush.msra.mxu0 0.0
    %88 = vmatpush.msra.mxu0 0.0
    %89 = vmatpush.msra.mxu0 0.0
    %90 = vmatpush.msra.mxu0 0.0
    %91 = vmatpush.msra.mxu0 0.0
    %92 = vmatpush.msra.mxu0 0.0
    %93 = vmatpush.msra.mxu0 0.0
    %94 = vmatpush.msra.mxu0 0.0
    %95 = vmatpush.msra.mxu0 %v71
    %96 = vmatpush.msra.mxu0 %v70
    %97 = vmatpush.msra.mxu0 %v69
    %98 = vmatpush.msra.mxu0 %v68
    %99 = vmatmul.f32.gmra.mxu0 %v78
    %v100 = vpop.f32.mrf.mxu0
    %v101 = vadd.f32 %v74, %v100
    %102 = vmatmul.f32.gmra.mxu0 %v81
    %v103 = vpop.f32.mrf.mxu0
    %v104 = vadd.f32 %v74, %v103
    %105 = vdwg.mxu0
    %v106 = vmul.f32 %v101, 5.656854
    %v107 = vmul.f32 %v104, 5.656854
    %108 = vst.msk [vmem:[#allocation8] sm:$0xff] %vm76, %v106
    %109 = vst.msk [vmem:[#allocation8 + $0x8] sm:$0xff] %vm76, %v107
    // Predicated region
    $region34: #{tpu_custom_call.1} parent=1 // pred_check
      _
    $region35: #{tpu_custom_call.1} parent=1 // pred_check_branch
      %111 = sbr.rel (0) target = $region37
    $region36: #{tpu_custom_call.1} parent=1 // pred_region
      %113 = vsyncadd [#allocation4], 0
      %s114 = sshll.u32 [#allocation8], 4
      %s115 = int_to_ptr.vmem [resolvable:$true] %s114
      %s116 = sshll.u32 %s5, 4
      %s117 = int_to_ptr.hbm [resolvable:$true] %s116
      %122 = dma.vmem_to_hbm [thread:$0]  %s115, 256, %s117, [#allocation4], 128, 128, 8
    $region37: #{tpu_custom_call.1} parent=1 // pred_fallthru
      _
    // Predicated region
    $region38: #{tpu_custom_call.1} parent=1 // pred_check
      _
    $region39: #{tpu_custom_call.1} parent=1 // pred_check_branch
      %124 = sbr.rel (0) target = $region41
    $region40: #{tpu_custom_call.1} parent=1 // pred_region
      %126 = dma.done [#allocation4], 256
    $region41: #{tpu_custom_call.1} parent=1 // pred_fallthru
      _
    %127 = vsyncpa [#allocation3], 1
    %128 = vsyncpa [#allocation6], 1
    %129 = vsyncpa [#allocation4], 1

</llo_original>
